<compile_context>
chip_gen: v5e
topology: v5e:2x2
jax: 0.10.0
libtpu: 0.0.40
codegen_flags: <defaults>
</compile_context>

<pallas_src>
import functools
import math

import jax
import jax.numpy as jnp
from jax import lax
from jax.experimental import pallas as pl
from jax.experimental.pallas import tpu as pltpu


def _round_up(n, m):
    return ((n + m - 1) // m) * m


def _rnn_kernel(x_ref, wih_ref, whh_ref, brnn_ref, wfc_ref, bfc_ref,
                o_ref, xp_ref, *, seq_len, batch_tile, carry_dtype):
    """One grid program == one batch tile; the whole time loop runs in-kernel.

    x_ref   : (seq_len * batch_tile, I)      time-major rows within this batch tile
    xp_ref  : (seq_len * batch_tile, H)      scratch holding the hoisted projection
    o_ref   : (batch_tile, O_pad)            lane-dense logits block
    """
    # ---- Phase 1 (non-recurrent): project all time steps in one MXU pass. ----
    xp_ref[...] = (
        jnp.dot(x_ref[...], wih_ref[...], preferred_element_type=jnp.float32)
        + brnn_ref[...]
    ).astype(xp_ref.dtype)

    # ---- Phase 2: serial recurrence, one (BT,H)x(H,H) MXU op + tanh per step. ----
    whh = whh_ref[...]                     # hoisted load (avoid per-iter reload)
    h0 = jnp.zeros((batch_tile, whh.shape[1]), carry_dtype)

    def step(t, h):
        base = pl.multiple_of(t * batch_tile, batch_tile)   # sublane-aligned offset
        pre = xp_ref[pl.ds(base, batch_tile), :] + jnp.dot(
            h.astype(whh.dtype), whh, preferred_element_type=jnp.float32)
        # tanh in carry_dtype: on v6e/v7x a bf16 carry drops a VALU pack per step and
        # halves EUP work on the serial critical path.
        return jnp.tanh(pre.astype(carry_dtype))

    # Serially-dependent steps: full unroll only pays for small T; bound it otherwise
    # to control instruction memory and vreg live ranges at BT=128/256.
    unroll = seq_len if seq_len <= 16 else 8
    h_last = lax.fori_loop(0, seq_len, step, h0, unroll=unroll)

    # ---- Phase 3: classifier on the final hidden state (O padded to 128 lanes). ----
    o_ref[...] = (
        jnp.dot(h_last.astype(wfc_ref.dtype), wfc_ref[...],
                preferred_element_type=jnp.float32)
        + bfc_ref[...]
    ).astype(o_ref.dtype)


@functools.partial(jax.jit,
                   static_argnames=("batch_tile", "compute_dtype", "carry_dtype"))
def simple_rnn_forward(x, params, *, batch_tile=None,
                       compute_dtype=jnp.float32, carry_dtype=None):
    """x: (B, T, input_size) float32 (batch-first, as in PyTorch). Returns (B, 10) f32.

    compute_dtype: MXU operand dtype (bf16 recommended on v6e/v7x).
    carry_dtype:   hidden-state carry / tanh dtype; defaults to compute_dtype.
                   On v5e with bf16 operands pass carry_dtype=jnp.float32 (no bf16 VPU/EUP).
    """
    if carry_dtype is None:
        carry_dtype = compute_dtype

    w_ih, w_hh, b_ih, b_hh, w_fc, b_fc = (
        params["w_ih"], params["w_hh"], params["b_ih"],
        params["b_hh"], params["w_fc"], params["b_fc"],
    )
    B, T, I = x.shape
    H = w_hh.shape[0]
    O = w_fc.shape[0]
    O_pad = _round_up(O, 128)              # lane-dense output block

    # ---- Batch-tile selection ----------------------------------------------------
    if batch_tile is not None:
        BT = batch_tile
    else:
        B8 = _round_up(B, 8)
        bt_cap = 256 if compute_dtype == jnp.bfloat16 else 128
        BT = min(B8, bt_cap)
        # Prefer >= 2 batch tiles (second TensorCore on v7x) when each tile would
        # still keep >= 64 rows on the serial recurrence matmul.
        if B8 // BT < 2 and B8 >= 128:
            BT = _round_up((B8 + 1) // 2, 8)
    assert BT % 8 == 0, "batch tile must be a multiple of the f32 sublane count (8)"
    B_pad = _round_up(B, BT)
    n_tiles = B_pad // BT                  # >1 => sharded across TCs on v7x ("parallel")

    # Pad batch to a tile multiple and lay x out time-major *within each batch tile*,
    # flattened to 2-D so phase 1 is a single (T*BT, I) @ (I, H) matmul.  XLA fuses
    # the pad + transpose + reshape into one pass over (tiny) x.
    x_p = x if B_pad == B else jnp.pad(x, ((0, B_pad - B), (0, 0), (0, 0)))
    x_flat = (
        x_p.reshape(n_tiles, BT, T, I)
        .transpose(0, 2, 1, 3)             # (tiles, T, BT, I)
        .reshape(n_tiles * T * BT, I)
        .astype(compute_dtype)
    )
    # NOTE: I=28 leaves the x block lane-sparse (28/128 lanes). Only pad I to 128 here
    # if profiling shows masked vld dominating phase 1 at large T*BT.

    # Weights stored transposed (in_features, out_features) so the kernel does plain
    # row-major x @ W matmuls on the MXU.  Biases stay f32 (added to f32-accumulated
    # matmul results).
    wih_t = w_ih.T.astype(compute_dtype)                       # (I, H)
    whh_t = w_hh.T.astype(compute_dtype)                       # (H, H)
    b_rnn = (b_ih + b_hh).astype(jnp.float32).reshape(1, H)    # (1, H)
    wfc_p = jnp.zeros((H, O_pad), compute_dtype).at[:, :O].set(
        w_fc.T.astype(compute_dtype))                          # (H, O_pad)
    bfc_p = jnp.zeros((1, O_pad), jnp.float32).at[:, :O].set(
        b_fc.astype(jnp.float32))                              # (1, O_pad)

    kernel = functools.partial(_rnn_kernel, seq_len=T, batch_tile=BT,
                               carry_dtype=carry_dtype)

    # VMEM budget estimate (double-buffered inputs/output + scratch), with headroom,
    # clamped to 64 MiB so it is valid on every generation (v7x has 64 MiB physical).
    itb = jnp.dtype(compute_dtype).itemsize
    vmem_est = (
        2 * T * BT * I * itb                       # x block (double-buffered)
        + T * BT * H * itb                         # xp scratch (compute_dtype)
        + 2 * (I * H + H * H + H * O_pad) * itb    # weights (double-buffered)
        + 2 * (H + O_pad) * 4                      # biases (f32)
        + 2 * BT * O_pad * 4                       # output block
    )
    vmem_limit = int(min(64 * 1024 * 1024, max(32 * 1024 * 1024, 1.5 * vmem_est)))

    # NOTE: weight/bias inputs have constant index_maps; if VMEM ever becomes tight at
    # very large T*BT, single-buffer them via pipeline_mode=pl.Buffered(1) and/or chunk
    # phase 1 over time with pltpu.emit_pipeline instead of one resident (T*BT, I) block.
    grid_spec = pltpu.PrefetchScalarGridSpec(
        num_scalar_prefetch=0,
        grid=(n_tiles,),
        in_specs=[
            pl.BlockSpec((T * BT, I), lambda i: (i, 0)),   # x (time-major per tile)
            pl.BlockSpec((I, H), lambda i: (0, 0)),        # W_ih^T
            pl.BlockSpec((H, H), lambda i: (0, 0)),        # W_hh^T
            pl.BlockSpec((1, H), lambda i: (0, 0)),        # b_ih + b_hh
            pl.BlockSpec((H, O_pad), lambda i: (0, 0)),    # W_fc^T (lane-padded)
            pl.BlockSpec((1, O_pad), lambda i: (0, 0)),    # b_fc   (lane-padded)
        ],
        out_specs=pl.BlockSpec((BT, O_pad), lambda i: (i, 0)),
        scratch_shapes=[pltpu.VMEM((T * BT, H), compute_dtype)],  # hoisted x-projection
    )

    out = pl.pallas_call(
        kernel,
        out_shape=jax.ShapeDtypeStruct((B_pad, O_pad), jnp.float32),
        grid_spec=grid_spec,
        compiler_params=pltpu.CompilerParams(
            # Batch tiles are independent -> megacore-parallel on v7x; the time
            # recurrence is fully inside the kernel so no "arbitrary" axis remains.
            dimension_semantics=("parallel",),
            vmem_limit_bytes=vmem_limit,
        ),
    )(x_flat, wih_t, whh_t, b_rnn, wfc_p, bfc_p)

    return out[:B, :O]


def init_params(key, input_size=28, hidden_size=128, out_size=10):
    """Deterministic init mimicking PyTorch default U(-1/sqrt(fan), 1/sqrt(fan))."""
    ks = jax.random.split(key, 6)
    k_rnn = 1.0 / math.sqrt(hidden_size)
    k_fc = 1.0 / math.sqrt(hidden_size)
    return {
        "w_ih": jax.random.uniform(ks[0], (hidden_size, input_size), jnp.float32, -k_rnn, k_rnn),
        "w_hh": jax.random.uniform(ks[1], (hidden_size, hidden_size), jnp.float32, -k_rnn, k_rnn),
        "b_ih": jax.random.uniform(ks[2], (hidden_size,), jnp.float32, -k_rnn, k_rnn),
        "b_hh": jax.random.uniform(ks[3], (hidden_size,), jnp.float32, -k_rnn, k_rnn),
        "w_fc": jax.random.uniform(ks[4], (out_size, hidden_size), jnp.float32, -k_fc, k_fc),
        "b_fc": jax.random.uniform(ks[5], (out_size,), jnp.float32, -k_fc, k_fc),
    }


def reference_forward(x, params, compute_dtype=jnp.float32, carry_dtype=None):
    """Pure-JAX reference matching PyTorch semantics (same operand casting as the kernel)."""
    if carry_dtype is None:
        carry_dtype = compute_dtype
    B, T, _ = x.shape
    H = params["w_hh"].shape[0]
    wih = params["w_ih"].astype(compute_dtype)
    whh = params["w_hh"].astype(compute_dtype)
    wfc = params["w_fc"].astype(compute_dtype)
    b_rnn = (params["b_ih"] + params["b_hh"]).astype(jnp.float32)
    xc = x.astype(compute_dtype)
    # Hoisted projection stored in compute_dtype, as in the kernel scratch.
    xp = (jnp.einsum("bti,hi->bth", xc, wih,
                     preferred_element_type=jnp.float32) + b_rnn).astype(compute_dtype)
    h = jnp.zeros((B, H), carry_dtype)
    for t in range(T):
        pre = xp[:, t, :] + jnp.dot(h.astype(compute_dtype), whh.T,
                                    preferred_element_type=jnp.float32)
        h = jnp.tanh(pre.astype(carry_dtype))
    return (
        jnp.dot(h.astype(compute_dtype), wfc.T, preferred_element_type=jnp.float32)
        + params["b_fc"].astype(jnp.float32)
    )


if __name__ == "__main__":
    key = jax.random.PRNGKey(0)
    k_param, k_x = jax.random.split(key)

    B, T, I = 2, 8, 28
    params = init_params(k_param, input_size=I, hidden_size=128, out_size=10)
    x = jax.random.normal(k_x, (B, T, I), dtype=jnp.float32)

    # f32 path (exact vs. PyTorch-style reference).
    out = jax.block_until_ready(simple_rnn_forward(x, params))
    ref = reference_forward(x, params)
    assert out.shape == (B, 10)
    assert jnp.allclose(out, ref, atol=1e-4, rtol=1e-4), "f32 mismatch vs reference"

    # bf16-operand + bf16-carry path (recommended on v6e/v7x MXU; pass
    # carry_dtype=jnp.float32 on v5e).  f32 MXU accumulation throughout.
    out_bf16 = jax.block_until_ready(
        simple_rnn_forward(x, params, compute_dtype=jnp.bfloat16))
    ref_bf16 = reference_forward(x, params, compute_dtype=jnp.bfloat16)
    assert out_bf16.shape == (B, 10)
    assert jnp.allclose(out_bf16, ref_bf16, atol=3e-2, rtol=3e-2), "bf16 mismatch vs reference"

    print("KERNEL_OK")
</pallas_src>

<mosaic_0001>
module attributes {stable_mosaic.version = 11 : i64} {
  func.func @_rnn_kernel(%arg0: i32, %arg1: memref<64x28xf32, #tpu.memory_space<vmem>>, %arg2: memref<28x128xf32, #tpu.memory_space<vmem>>, %arg3: memref<128x128xf32, #tpu.memory_space<vmem>>, %arg4: memref<1x128xf32, #tpu.memory_space<vmem>>, %arg5: memref<128x128xf32, #tpu.memory_space<vmem>>, %arg6: memref<1x128xf32, #tpu.memory_space<vmem>>, %arg7: memref<8x128xf32, #tpu.memory_space<vmem>>, %arg8: memref<64x128xf32, #tpu.memory_space<vmem>>) attributes {dimension_semantics = [#tpu.dimension_semantics<parallel>], iteration_bounds = array<i64: 1>, scalar_prefetch = 0 : i64, scratch_operands = 1 : i64, tpu.core_type = #tpu.core_type<tc>, window_params = [{transform_indices = @transform_0, window_bounds = array<i64: 64, 28>}, {pipeline_mode = #tpu.pipeline_mode<synchronous>, transform_indices = @transform_1, window_bounds = array<i64: 28, 128>}, {pipeline_mode = #tpu.pipeline_mode<synchronous>, transform_indices = @transform_2, window_bounds = array<i64: 128, 128>}, {pipeline_mode = #tpu.pipeline_mode<synchronous>, transform_indices = @transform_3, window_bounds = array<i64: 1, 128>}, {pipeline_mode = #tpu.pipeline_mode<synchronous>, transform_indices = @transform_4, window_bounds = array<i64: 128, 128>}, {pipeline_mode = #tpu.pipeline_mode<synchronous>, transform_indices = @transform_5, window_bounds = array<i64: 1, 128>}, {transform_indices = @transform_6, window_bounds = array<i64: 8, 128>}]} {
    %c0 = arith.constant 0 : index
    %c0_0 = arith.constant 0 : index
    %0 = vector.load %arg1[%c0, %c0_0] : memref<64x28xf32, #tpu.memory_space<vmem>>, vector<64x28xf32>
    %c0_1 = arith.constant 0 : index
    %c0_2 = arith.constant 0 : index
    %1 = vector.load %arg2[%c0_1, %c0_2] : memref<28x128xf32, #tpu.memory_space<vmem>>, vector<28x128xf32>
    %cst = arith.constant dense<0.000000e+00> : vector<64x128xf32>
    %2 = tpu.matmul %0, %1, %cst {dimension_numbers = #tpu.dot_dimension_numbers<[1], [0], [0], [1], [0, 0, 1, 1], [], []>} : vector<64x28xf32>, vector<28x128xf32>, vector<64x128xf32> -> vector<64x128xf32>
    %c0_3 = arith.constant 0 : index
    %c0_4 = arith.constant 0 : index
    %3 = vector.load %arg4[%c0_3, %c0_4] : memref<1x128xf32, #tpu.memory_space<vmem>>, vector<1x128xf32>
    %4 = vector.broadcast %3 : vector<1x128xf32> to vector<64x128xf32>
    %5 = arith.addf %2, %4 : vector<64x128xf32>
    %c0_5 = arith.constant 0 : index
    %c0_6 = arith.constant 0 : index
    %6 = vector.load %arg8[%c0_5, %c0_6] : memref<64x128xf32, #tpu.memory_space<vmem>>, vector<64x128xf32>
    tpu.vector_store %arg8[%c0_5, %c0_6], %5 {strides = array<i32>} : memref<64x128xf32, #tpu.memory_space<vmem>>, vector<64x128xf32>,
    %c0_7 = arith.constant 0 : index
    %c0_8 = arith.constant 0 : index
    %7 = vector.load %arg3[%c0_7, %c0_8] : memref<128x128xf32, #tpu.memory_space<vmem>>, vector<128x128xf32>
    %cst_9 = arith.constant 0.000000e+00 : f32
    %8 = vector.broadcast %cst_9 : f32 to vector<8x128xf32>
    %c0_i32 = arith.constant 0 : i32
    %c8_i32 = arith.constant 8 : i32
    %9 = arith.muli %c0_i32, %c8_i32 : i32
    %10 = tpu.assume_multiple %9, 8 : i32
    %11 = arith.index_cast %10 : i32 to index
    %c0_10 = arith.constant 0 : index
    %12 = vector.load %arg8[%11, %c0_10] : memref<64x128xf32, #tpu.memory_space<vmem>>, vector<8x128xf32>
    %cst_11 = arith.constant dense<0.000000e+00> : vector<8x128xf32>
    %13 = tpu.matmul %8, %7, %cst_11 {dimension_numbers = #tpu.dot_dimension_numbers<[1], [0], [0], [1], [0, 0, 1, 1], [], []>} : vector<8x128xf32>, vector<128x128xf32>, vector<8x128xf32> -> vector<8x128xf32>
    %14 = arith.addf %12, %13 : vector<8x128xf32>
    %15 = math.tanh %14 : vector<8x128xf32>
    %c1_i32 = arith.constant 1 : i32
    %c8_i32_12 = arith.constant 8 : i32
    %16 = arith.muli %c1_i32, %c8_i32_12 : i32
    %17 = tpu.assume_multiple %16, 8 : i32
    %18 = arith.index_cast %17 : i32 to index
    %c0_13 = arith.constant 0 : index
    %19 = vector.load %arg8[%18, %c0_13] : memref<64x128xf32, #tpu.memory_space<vmem>>, vector<8x128xf32>
    %cst_14 = arith.constant dense<0.000000e+00> : vector<8x128xf32>
    %20 = tpu.matmul %15, %7, %cst_14 {dimension_numbers = #tpu.dot_dimension_numbers<[1], [0], [0], [1], [0, 0, 1, 1], [], []>} : vector<8x128xf32>, vector<128x128xf32>, vector<8x128xf32> -> vector<8x128xf32>
    %21 = arith.addf %19, %20 : vector<8x128xf32>
    %22 = math.tanh %21 : vector<8x128xf32>
    %c2_i32 = arith.constant 2 : i32
    %c8_i32_15 = arith.constant 8 : i32
    %23 = arith.muli %c2_i32, %c8_i32_15 : i32
    %24 = tpu.assume_multiple %23, 8 : i32
    %25 = arith.index_cast %24 : i32 to index
    %c0_16 = arith.constant 0 : index
    %26 = vector.load %arg8[%25, %c0_16] : memref<64x128xf32, #tpu.memory_space<vmem>>, vector<8x128xf32>
    %cst_17 = arith.constant dense<0.000000e+00> : vector<8x128xf32>
    %27 = tpu.matmul %22, %7, %cst_17 {dimension_numbers = #tpu.dot_dimension_numbers<[1], [0], [0], [1], [0, 0, 1, 1], [], []>} : vector<8x128xf32>, vector<128x128xf32>, vector<8x128xf32> -> vector<8x128xf32>
    %28 = arith.addf %26, %27 : vector<8x128xf32>
    %29 = math.tanh %28 : vector<8x128xf32>
    %c3_i32 = arith.constant 3 : i32
    %c8_i32_18 = arith.constant 8 : i32
    %30 = arith.muli %c3_i32, %c8_i32_18 : i32
    %31 = tpu.assume_multiple %30, 8 : i32
    %32 = arith.index_cast %31 : i32 to index
    %c0_19 = arith.constant 0 : index
    %33 = vector.load %arg8[%32, %c0_19] : memref<64x128xf32, #tpu.memory_space<vmem>>, vector<8x128xf32>
    %cst_20 = arith.constant dense<0.000000e+00> : vector<8x128xf32>
    %34 = tpu.matmul %29, %7, %cst_20 {dimension_numbers = #tpu.dot_dimension_numbers<[1], [0], [0], [1], [0, 0, 1, 1], [], []>} : vector<8x128xf32>, vector<128x128xf32>, vector<8x128xf32> -> vector<8x128xf32>
    %35 = arith.addf %33, %34 : vector<8x128xf32>
    %36 = math.tanh %35 : vector<8x128xf32>
    %c4_i32 = arith.constant 4 : i32
    %c8_i32_21 = arith.constant 8 : i32
    %37 = arith.muli %c4_i32, %c8_i32_21 : i32
    %38 = tpu.assume_multiple %37, 8 : i32
    %39 = arith.index_cast %38 : i32 to index
    %c0_22 = arith.constant 0 : index
    %40 = vector.load %arg8[%39, %c0_22] : memref<64x128xf32, #tpu.memory_space<vmem>>, vector<8x128xf32>
    %cst_23 = arith.constant dense<0.000000e+00> : vector<8x128xf32>
    %41 = tpu.matmul %36, %7, %cst_23 {dimension_numbers = #tpu.dot_dimension_numbers<[1], [0], [0], [1], [0, 0, 1, 1], [], []>} : vector<8x128xf32>, vector<128x128xf32>, vector<8x128xf32> -> vector<8x128xf32>
    %42 = arith.addf %40, %41 : vector<8x128xf32>
    %43 = math.tanh %42 : vector<8x128xf32>
    %c5_i32 = arith.constant 5 : i32
    %c8_i32_24 = arith.constant 8 : i32
    %44 = arith.muli %c5_i32, %c8_i32_24 : i32
    %45 = tpu.assume_multiple %44, 8 : i32
    %46 = arith.index_cast %45 : i32 to index
    %c0_25 = arith.constant 0 : index
    %47 = vector.load %arg8[%46, %c0_25] : memref<64x128xf32, #tpu.memory_space<vmem>>, vector<8x128xf32>
    %cst_26 = arith.constant dense<0.000000e+00> : vector<8x128xf32>
    %48 = tpu.matmul %43, %7, %cst_26 {dimension_numbers = #tpu.dot_dimension_numbers<[1], [0], [0], [1], [0, 0, 1, 1], [], []>} : vector<8x128xf32>, vector<128x128xf32>, vector<8x128xf32> -> vector<8x128xf32>
    %49 = arith.addf %47, %48 : vector<8x128xf32>
    %50 = math.tanh %49 : vector<8x128xf32>
    %c6_i32 = arith.constant 6 : i32
    %c8_i32_27 = arith.constant 8 : i32
    %51 = arith.muli %c6_i32, %c8_i32_27 : i32
    %52 = tpu.assume_multiple %51, 8 : i32
    %53 = arith.index_cast %52 : i32 to index
    %c0_28 = arith.constant 0 : index
    %54 = vector.load %arg8[%53, %c0_28] : memref<64x128xf32, #tpu.memory_space<vmem>>, vector<8x128xf32>
    %cst_29 = arith.constant dense<0.000000e+00> : vector<8x128xf32>
    %55 = tpu.matmul %50, %7, %cst_29 {dimension_numbers = #tpu.dot_dimension_numbers<[1], [0], [0], [1], [0, 0, 1, 1], [], []>} : vector<8x128xf32>, vector<128x128xf32>, vector<8x128xf32> -> vector<8x128xf32>
    %56 = arith.addf %54, %55 : vector<8x128xf32>
    %57 = math.tanh %56 : vector<8x128xf32>
    %c7_i32 = arith.constant 7 : i32
    %c8_i32_30 = arith.constant 8 : i32
    %58 = arith.muli %c7_i32, %c8_i32_30 : i32
    %59 = tpu.assume_multiple %58, 8 : i32
    %60 = arith.index_cast %59 : i32 to index
    %c0_31 = arith.constant 0 : index
    %61 = vector.load %arg8[%60, %c0_31] : memref<64x128xf32, #tpu.memory_space<vmem>>, vector<8x128xf32>
    %cst_32 = arith.constant dense<0.000000e+00> : vector<8x128xf32>
    %62 = tpu.matmul %57, %7, %cst_32 {dimension_numbers = #tpu.dot_dimension_numbers<[1], [0], [0], [1], [0, 0, 1, 1], [], []>} : vector<8x128xf32>, vector<128x128xf32>, vector<8x128xf32> -> vector<8x128xf32>
    %63 = arith.addf %61, %62 : vector<8x128xf32>
    %64 = math.tanh %63 : vector<8x128xf32>
    %c8_i32_33 = arith.constant 8 : i32
    %c0_34 = arith.constant 0 : index
    %c0_35 = arith.constant 0 : index
    %65 = vector.load %arg5[%c0_34, %c0_35] : memref<128x128xf32, #tpu.memory_space<vmem>>, vector<128x128xf32>
    %cst_36 = arith.constant dense<0.000000e+00> : vector<8x128xf32>
    %66 = tpu.matmul %64, %65, %cst_36 {dimension_numbers = #tpu.dot_dimension_numbers<[1], [0], [0], [1], [0, 0, 1, 1], [], []>} : vector<8x128xf32>, vector<128x128xf32>, vector<8x128xf32> -> vector<8x128xf32>
    %c0_37 = arith.constant 0 : index
    %c0_38 = arith.constant 0 : index
    %67 = vector.load %arg6[%c0_37, %c0_38] : memref<1x128xf32, #tpu.memory_space<vmem>>, vector<1x128xf32>
    %68 = vector.broadcast %67 : vector<1x128xf32> to vector<8x128xf32>
    %69 = arith.addf %66, %68 : vector<8x128xf32>
    %c0_39 = arith.constant 0 : index
    %c0_40 = arith.constant 0 : index
    %70 = vector.load %arg7[%c0_39, %c0_40] : memref<8x128xf32, #tpu.memory_space<vmem>>, vector<8x128xf32>
    tpu.vector_store %arg7[%c0_39, %c0_40], %69 {strides = array<i32>} : memref<8x128xf32, #tpu.memory_space<vmem>>, vector<8x128xf32>,
    return
  }
  func.func @transform_0(%arg0: i32) -> (i32, i32) {
    %c0_i32 = arith.constant 0 : i32
    %c0_i32_0 = arith.constant 0 : i32
    return %arg0, %c0_i32 : i32, i32
  }
  func.func @transform_1(%arg0: i32) -> (i32, i32) {
    %c0_i32 = arith.constant 0 : i32
    %c0_i32_0 = arith.constant 0 : i32
    %c0_i32_1 = arith.constant 0 : i32
    return %c0_i32, %c0_i32_0 : i32, i32
  }
  func.func @transform_2(%arg0: i32) -> (i32, i32) {
    %c0_i32 = arith.constant 0 : i32
    %c0_i32_0 = arith.constant 0 : i32
    %c0_i32_1 = arith.constant 0 : i32
    return %c0_i32, %c0_i32_0 : i32, i32
  }
  func.func @transform_3(%arg0: i32) -> (i32, i32) {
    %c0_i32 = arith.constant 0 : i32
    %c0_i32_0 = arith.constant 0 : i32
    %c0_i32_1 = arith.constant 0 : i32
    return %c0_i32, %c0_i32_0 : i32, i32
  }
  func.func @transform_4(%arg0: i32) -> (i32, i32) {
    %c0_i32 = arith.constant 0 : i32
    %c0_i32_0 = arith.constant 0 : i32
    %c0_i32_1 = arith.constant 0 : i32
    return %c0_i32, %c0_i32_0 : i32, i32
  }
  func.func @transform_5(%arg0: i32) -> (i32, i32) {
    %c0_i32 = arith.constant 0 : i32
    %c0_i32_0 = arith.constant 0 : i32
    %c0_i32_1 = arith.constant 0 : i32
    return %c0_i32, %c0_i32_0 : i32, i32
  }
  func.func @transform_6(%arg0: i32) -> (i32, i32) {
    %c0_i32 = arith.constant 0 : i32
    %c0_i32_0 = arith.constant 0 : i32
    return %arg0, %c0_i32 : i32, i32
  }
}

</mosaic_0001>

<llo_original>
// kernel: simple_rnn_forward.1
$region0: #{simple_rnn_forward.1}
  #allocation0 [shape = 'u32[]', space=smem, size = 0x4, offset = 0x4, fixed_abs, tag = 'smem constant byte address 0x4 - core index']
  #allocation1 [shape = 'u32[72,128]{1,0:T(1,128)}', space=vmem, size = 0x9000, scoped, tag = 'internal scratch']
  #allocation2 [shape = 'f32[64,128]{1,0:T(8,128)}', space=vmem, size = 0x8000, scoped, tag = 'scratch operand']
  %s0 = inlined_call_operand.vmem [shape: f32[64,28], index: 0, kind: input, shape index: {}]
  %s1 = inlined_call_operand.vmem [shape: f32[28,128], index: 1, kind: input, shape index: {}]
  %s2 = inlined_call_operand.vmem [shape: f32[128,128], index: 2, kind: input, shape index: {}]
  %s3 = inlined_call_operand.vmem [shape: f32[1,128], index: 3, kind: input, shape index: {}]
  %s4 = inlined_call_operand.vmem [shape: f32[128,128], index: 4, kind: input, shape index: {}]
  %s5 = inlined_call_operand.vmem [shape: f32[1,128], index: 5, kind: input, shape index: {}]
  %s6 = inlined_call_operand.vmem [shape: f32[8,128], index: 6, kind: output, shape index: {}]
  %s7 = sld [smem:[#allocation0]]
  $region34: #{simple_rnn_forward.1} parent=0
    _
  %s9 = ssub.s32 1, %s7
  %s10 = scalar_select 0, %s9, %s7
  // Predicated region
  $region2: #{simple_rnn_forward.1} parent=0 // pred_check
    _
  $region3: #{simple_rnn_forward.1} parent=0 // pred_check_branch
    %12 = sbr.rel (0) target = $region5
  $region4: #{simple_rnn_forward.1} parent=0 // pred_region
    _
  $region5: #{simple_rnn_forward.1} parent=0 // pred_fallthru
    _
  // Predicated region
  $region6: #{simple_rnn_forward.1} parent=0 // pred_check
    _
  $region7: #{simple_rnn_forward.1} parent=0 // pred_check_branch
    %14 = sbr.rel (0) target = $region9
  $region8: #{simple_rnn_forward.1} parent=0 // pred_region
    _
  $region9: #{simple_rnn_forward.1} parent=0 // pred_fallthru
    _
  // Predicated region
  $region10: #{simple_rnn_forward.1} parent=0 // pred_check
    _
  $region11: #{simple_rnn_forward.1} parent=0 // pred_check_branch
    %16 = sbr.rel (0) target = $region13
  $region12: #{simple_rnn_forward.1} parent=0 // pred_region
    _
  $region13: #{simple_rnn_forward.1} parent=0 // pred_fallthru
    _
  // Predicated region
  $region14: #{simple_rnn_forward.1} parent=0 // pred_check
    _
  $region15: #{simple_rnn_forward.1} parent=0 // pred_check_branch
    %18 = sbr.rel (0) target = $region17
  $region16: #{simple_rnn_forward.1} parent=0 // pred_region
    _
  $region17: #{simple_rnn_forward.1} parent=0 // pred_fallthru
    _
  // Predicated region
  $region18: #{simple_rnn_forward.1} parent=0 // pred_check
    _
  $region19: #{simple_rnn_forward.1} parent=0 // pred_check_branch
    %20 = sbr.rel (0) target = $region21
  $region20: #{simple_rnn_forward.1} parent=0 // pred_region
    _
  $region21: #{simple_rnn_forward.1} parent=0 // pred_fallthru
    _
  // Predicated region
  $region22: #{simple_rnn_forward.1} parent=0 // pred_check
    _
  $region23: #{simple_rnn_forward.1} parent=0 // pred_check_branch
    %22 = sbr.rel (0) target = $region25
  $region24: #{simple_rnn_forward.1} parent=0 // pred_region
    _
  $region25: #{simple_rnn_forward.1} parent=0 // pred_fallthru
    _
  %v23 = vld [vmem:[%s0] sm:$0xff]
  %v24 = vld [vmem:[%s0 + $0x8] sm:$0xff]
  %v25 = vld [vmem:[%s0 + $0x10] sm:$0xff]
  %v26 = vld [vmem:[%s0 + $0x18] sm:$0xff]
  %v27 = vld [vmem:[%s0 + $0x20] sm:$0xff]
  %v28 = vld [vmem:[%s0 + $0x28] sm:$0xff]
  %v29 = vld [vmem:[%s0 + $0x30] sm:$0xff]
  %v30 = vld [vmem:[%s0 + $0x38] sm:$0xff]
  %v31 = vld [vmem:[%s1] sm:$0xff]
  %v32 = vld [vmem:[%s1 + $0x8] sm:$0xff]
  %v33 = vld [vmem:[%s1 + $0x10] sm:$0xff]
  %v34 = vld [vmem:[%s1 + $0x18] sm:$0xf]
  %v35 = vld [vmem:[%s3] sm:$0x1]
  %v37 = vperm.slane %v35, 0
  %vm39 = vcmask 228352
  %v41 = vsel %vm39, %v23, 0
  %v44 = vsel %vm39, %v24, 0
  %v47 = vsel %vm39, %v25, 0
  %v50 = vsel %vm39, %v26, 0
  %v53 = vsel %vm39, %v27, 0
  %v56 = vsel %vm39, %v28, 0
  %v59 = vsel %vm39, %v29, 0
  %v62 = vsel %vm39, %v30, 0
  %vm64 = vcmask 1043456
  %v66 = vsel %vm64, %v34, 0
  %68 = vmatpush.msra.mxu0 0.0
  %69 = vmatpush.msra.mxu0 0.0
  %70 = vmatpush.msra.mxu0 0.0
  %71 = vmatpush.msra.mxu0 0.0
  %72 = vmatpush.msra.mxu0 0.0
  %73 = vmatpush.msra.mxu0 0.0
  %74 = vmatpush.msra.mxu0 0.0
  %75 = vmatpush.msra.mxu0 0.0
  %76 = vmatpush.msra.mxu0 0.0
  %77 = vmatpush.msra.mxu0 0.0
  %78 = vmatpush.msra.mxu0 0.0
  %79 = vmatpush.msra.mxu0 0.0
  %80 = vmatpush.msra.mxu0 %v66
  %81 = vmatpush.msra.mxu0 %v33
  %82 = vmatpush.msra.mxu0 %v32
  %83 = vmatpush.msra.mxu0 %v31
  %84 = vmatmul.f32.gmra.mxu0 %v41
  %v85 = vpop.f32.mrf.mxu0
  %v86 = vadd.f32 %v37, %v85
  %87 = vmatmul.f32.gmra.mxu0 %v44
  %v88 = vpop.f32.mrf.mxu0
  %v89 = vadd.f32 %v37, %v88
  %90 = vmatmul.f32.gmra.mxu0 %v47
  %v91 = vpop.f32.mrf.mxu0
  %v92 = vadd.f32 %v37, %v91
  %93 = vmatmul.f32.gmra.mxu0 %v50
  %v94 = vpop.f32.mrf.mxu0
  %v95 = vadd.f32 %v37, %v94
  %96 = vmatmul.f32.gmra.mxu0 %v53
  %v97 = vpop.f32.mrf.mxu0
  %v98 = vadd.f32 %v37, %v97
  %99 = vmatmul.f32.gmra.mxu0 %v56
  %v100 = vpop.f32.mrf.mxu0
  %v101 = vadd.f32 %v37, %v100
  %102 = vmatmul.f32.gmra.mxu0 %v59
  %v103 = vpop.f32.mrf.mxu0
  %v104 = vadd.f32 %v37, %v103
  %105 = vmatmul.f32.gmra.mxu0 %v62
  %v106 = vpop.f32.mrf.mxu0
  %v107 = vadd.f32 %v37, %v106
  %108 = vdwg.mxu0
  %109 = vst [vmem:[#allocation2] sm:$0xff] %v86
  %110 = vst [vmem:[#allocation2 + $0x8] sm:$0xff] %v89
  %111 = vst [vmem:[#allocation2 + $0x10] sm:$0xff] %v92
  %112 = vst [vmem:[#allocation2 + $0x18] sm:$0xff] %v95
  %113 = vst [vmem:[#allocation2 + $0x20] sm:$0xff] %v98
  %114 = vst [vmem:[#allocation2 + $0x28] sm:$0xff] %v101
  %115 = vst [vmem:[#allocation2 + $0x30] sm:$0xff] %v104
  %116 = vst [vmem:[#allocation2 + $0x38] sm:$0xff] %v107
  %v117 = vld [vmem:[%s2] sm:$0xff]
  %v118 = vld [vmem:[%s2 + $0x8] sm:$0xff]
  %v119 = vld [vmem:[%s2 + $0x10] sm:$0xff]
  %v120 = vld [vmem:[%s2 + $0x18] sm:$0xff]
  %v121 = vld [vmem:[%s2 + $0x20] sm:$0xff]
  %v122 = vld [vmem:[%s2 + $0x28] sm:$0xff]
  %v123 = vld [vmem:[%s2 + $0x30] sm:$0xff]
  %v124 = vld [vmem:[%s2 + $0x38] sm:$0xff]
  %v125 = vld [vmem:[%s2 + $0x40] sm:$0xff]
  %v126 = vld [vmem:[%s2 + $0x48] sm:$0xff]
  %v127 = vld [vmem:[%s2 + $0x50] sm:$0xff]
  %v128 = vld [vmem:[%s2 + $0x58] sm:$0xff]
  %v129 = vld [vmem:[%s2 + $0x60] sm:$0xff]
  %v130 = vld [vmem:[%s2 + $0x68] sm:$0xff]
  %v131 = vld [vmem:[%s2 + $0x70] sm:$0xff]
  %v132 = vld [vmem:[%s2 + $0x78] sm:$0xff]
  %v133 = vld [vmem:[#allocation2] sm:$0xff]
  %134 = vmatpush.msra.mxu0 %v132
  %135 = vmatpush.msra.mxu0 %v131
  %136 = vmatpush.msra.mxu0 %v130
  %137 = vmatpush.msra.mxu0 %v129
  %138 = vmatpush.msra.mxu0 %v128
  %139 = vmatpush.msra.mxu0 %v127
  %140 = vmatpush.msra.mxu0 %v126
  %141 = vmatpush.msra.mxu0 %v125
  %142 = vmatpush.msra.mxu0 %v124
  %143 = vmatpush.msra.mxu0 %v123
  %144 = vmatpush.msra.mxu0 %v122
  %145 = vmatpush.msra.mxu0 %v121
  %146 = vmatpush.msra.mxu0 %v120
  %147 = vmatpush.msra.mxu0 %v119
  %148 = vmatpush.msra.mxu0 %v118
  %149 = vmatpush.msra.mxu0 %v117
  %150 = vmatmul.f32.gmra.mxu0 0.0
  %v151 = vpop.f32.mrf.mxu0
  %v152 = vadd.f32 0.0, %v151
  %153 = vdwg.mxu0
  %v154 = vadd.f32 %v133, %v152
  %v155 = vtanh.pop %v154
  %s156 = scalar_lea.vmem [#allocation2], 8
  %v157 = vld [vmem:[%s156] sm:$0xff]
  %158 = vmatpush.msra.mxu0 %v132
  %159 = vmatpush.msra.mxu0 %v131
  %160 = vmatpush.msra.mxu0 %v130
  %161 = vmatpush.msra.mxu0 %v129
  %162 = vmatpush.msra.mxu0 %v128
  %163 = vmatpush.msra.mxu0 %v127
  %164 = vmatpush.msra.mxu0 %v126
  %165 = vmatpush.msra.mxu0 %v125
  %166 = vmatpush.msra.mxu0 %v124
  %167 = vmatpush.msra.mxu0 %v123
  %168 = vmatpush.msra.mxu0 %v122
  %169 = vmatpush.msra.mxu0 %v121
  %170 = vmatpush.msra.mxu0 %v120
  %171 = vmatpush.msra.mxu0 %v119
  %172 = vmatpush.msra.mxu0 %v118
  %173 = vmatpush.msra.mxu0 %v117
  %174 = vmatmul.f32.gmra.mxu0 %v155
  %v175 = vpop.f32.mrf.mxu0
  %v176 = vadd.f32 0.0, %v175
  %177 = vdwg.mxu0
  %v178 = vadd.f32 %v157, %v176
  %v179 = vtanh.pop %v178
  %s180 = scalar_lea.vmem [#allocation2], 16
  %v181 = vld [vmem:[%s180] sm:$0xff]
  %182 = vmatpush.msra.mxu0 %v132
  %183 = vmatpush.msra.mxu0 %v131
  %184 = vmatpush.msra.mxu0 %v130
  %185 = vmatpush.msra.mxu0 %v129
  %186 = vmatpush.msra.mxu0 %v128
  %187 = vmatpush.msra.mxu0 %v127
  %188 = vmatpush.msra.mxu0 %v126
  %189 = vmatpush.msra.mxu0 %v125
  %190 = vmatpush.msra.mxu0 %v124
  %191 = vmatpush.msra.mxu0 %v123
  %192 = vmatpush.msra.mxu0 %v122
  %193 = vmatpush.msra.mxu0 %v121
  %194 = vmatpush.msra.mxu0 %v120
  %195 = vmatpush.msra.mxu0 %v119
  %196 = vmatpush.msra.mxu0 %v118
  %197 = vmatpush.msra.mxu0 %v117
  %198 = vmatmul.f32.gmra.mxu0 %v179
  %v199 = vpop.f32.mrf.mxu0
  %v200 = vadd.f32 0.0, %v199
  %201 = vdwg.mxu0
  %v202 = vadd.f32 %v181, %v200
  %v203 = vtanh.pop %v202
  %s204 = scalar_lea.vmem [#allocation2], 24
  %v205 = vld [vmem:[%s204] sm:$0xff]
  %206 = vmatpush.msra.mxu0 %v132
  %207 = vmatpush.msra.mxu0 %v131
  %208 = vmatpush.msra.mxu0 %v130
  %209 = vmatpush.msra.mxu0 %v129
  %210 = vmatpush.msra.mxu0 %v128
  %211 = vmatpush.msra.mxu0 %v127
  %212 = vmatpush.msra.mxu0 %v126
  %213 = vmatpush.msra.mxu0 %v125
  %214 = vmatpush.msra.mxu0 %v124
  %215 = vmatpush.msra.mxu0 %v123
  %216 = vmatpush.msra.mxu0 %v122
  %217 = vmatpush.msra.mxu0 %v121
  %218 = vmatpush.msra.mxu0 %v120
  %219 = vmatpush.msra.mxu0 %v119
  %220 = vmatpush.msra.mxu0 %v118
  %221 = vmatpush.msra.mxu0 %v117
  %222 = vmatmul.f32.gmra.mxu0 %v203
  %v223 = vpop.f32.mrf.mxu0
  %v224 = vadd.f32 0.0, %v223
  %225 = vdwg.mxu0
  %v226 = vadd.f32 %v205, %v224
  %v227 = vtanh.pop %v226
  %s228 = scalar_lea.vmem [#allocation2], 32
  %v229 = vld [vmem:[%s228] sm:$0xff]
  %230 = vmatpush.msra.mxu0 %v132
  %231 = vmatpush.msra.mxu0 %v131
  %232 = vmatpush.msra.mxu0 %v130
  %233 = vmatpush.msra.mxu0 %v129
  %234 = vmatpush.msra.mxu0 %v128
  %235 = vmatpush.msra.mxu0 %v127
  %236 = vmatpush.msra.mxu0 %v126
  %237 = vmatpush.msra.mxu0 %v125
  %238 = vmatpush.msra.mxu0 %v124
  %239 = vmatpush.msra.mxu0 %v123
  %240 = vmatpush.msra.mxu0 %v122
  %241 = vmatpush.msra.mxu0 %v121
  %242 = vmatpush.msra.mxu0 %v120
  %243 = vmatpush.msra.mxu0 %v119
  %244 = vmatpush.msra.mxu0 %v118
  %245 = vmatpush.msra.mxu0 %v117
  %246 = vmatmul.f32.gmra.mxu0 %v227
  %v247 = vpop.f32.mrf.mxu0
  %v248 = vadd.f32 0.0, %v247
  %249 = vdwg.mxu0
  %v250 = vadd.f32 %v229, %v248
  %v251 = vtanh.pop %v250
  %s252 = scalar_lea.vmem [#allocation2], 40
  %v253 = vld [vmem:[%s252] sm:$0xff]
  %254 = vmatpush.msra.mxu0 %v132
  %255 = vmatpush.msra.mxu0 %v131
  %256 = vmatpush.msra.mxu0 %v130
  %257 = vmatpush.msra.mxu0 %v129
  %258 = vmatpush.msra.mxu0 %v128
  %259 = vmatpush.msra.mxu0 %v127
  %260 = vmatpush.msra.mxu0 %v126
  %261 = vmatpush.msra.mxu0 %v125
  %262 = vmatpush.msra.mxu0 %v124
  %263 = vmatpush.msra.mxu0 %v123
  %264 = vmatpush.msra.mxu0 %v122
  %265 = vmatpush.msra.mxu0 %v121
  %266 = vmatpush.msra.mxu0 %v120
  %267 = vmatpush.msra.mxu0 %v119
  %268 = vmatpush.msra.mxu0 %v118
  %269 = vmatpush.msra.mxu0 %v117
  %270 = vmatmul.f32.gmra.mxu0 %v251
  %v271 = vpop.f32.mrf.mxu0
  %v272 = vadd.f32 0.0, %v271
  %273 = vdwg.mxu0
  %v274 = vadd.f32 %v253, %v272
  %v275 = vtanh.pop %v274
  %s276 = scalar_lea.vmem [#allocation2], 48
  %v277 = vld [vmem:[%s276] sm:$0xff]
  %278 = vmatpush.msra.mxu0 %v132
  %279 = vmatpush.msra.mxu0 %v131
  %280 = vmatpush.msra.mxu0 %v130
  %281 = vmatpush.msra.mxu0 %v129
  %282 = vmatpush.msra.mxu0 %v128
  %283 = vmatpush.msra.mxu0 %v127
  %284 = vmatpush.msra.mxu0 %v126
  %285 = vmatpush.msra.mxu0 %v125
  %286 = vmatpush.msra.mxu0 %v124
  %287 = vmatpush.msra.mxu0 %v123
  %288 = vmatpush.msra.mxu0 %v122
  %289 = vmatpush.msra.mxu0 %v121
  %290 = vmatpush.msra.mxu0 %v120
  %291 = vmatpush.msra.mxu0 %v119
  %292 = vmatpush.msra.mxu0 %v118
  %293 = vmatpush.msra.mxu0 %v117
  %294 = vmatmul.f32.gmra.mxu0 %v275
  %v295 = vpop.f32.mrf.mxu0
  %v296 = vadd.f32 0.0, %v295
  %297 = vdwg.mxu0
  %v298 = vadd.f32 %v277, %v296
  %v299 = vtanh.pop %v298
  %s300 = scalar_lea.vmem [#allocation2], 56
  %v301 = vld [vmem:[%s300] sm:$0xff]
  %302 = vmatpush.msra.mxu0 %v132
  %303 = vmatpush.msra.mxu0 %v131
  %304 = vmatpush.msra.mxu0 %v130
  %305 = vmatpush.msra.mxu0 %v129
  %306 = vmatpush.msra.mxu0 %v128
  %307 = vmatpush.msra.mxu0 %v127
  %308 = vmatpush.msra.mxu0 %v126
  %309 = vmatpush.msra.mxu0 %v125
  %310 = vmatpush.msra.mxu0 %v124
  %311 = vmatpush.msra.mxu0 %v123
  %312 = vmatpush.msra.mxu0 %v122
  %313 = vmatpush.msra.mxu0 %v121
  %314 = vmatpush.msra.mxu0 %v120
  %315 = vmatpush.msra.mxu0 %v119
  %316 = vmatpush.msra.mxu0 %v118
  %317 = vmatpush.msra.mxu0 %v117
  %318 = vmatmul.f32.gmra.mxu0 %v299
  %v319 = vpop.f32.mrf.mxu0
  %v320 = vadd.f32 0.0, %v319
  %321 = vdwg.mxu0
  %v322 = vadd.f32 %v301, %v320
  %v323 = vtanh.pop %v322
  %v324 = vld [vmem:[%s4] sm:$0xff]
  %v325 = vld [vmem:[%s4 + $0x8] sm:$0xff]
  %v326 = vld [vmem:[%s4 + $0x10] sm:$0xff]
  %v327 = vld [vmem:[%s4 + $0x18] sm:$0xff]
  %v328 = vld [vmem:[%s4 + $0x20] sm:$0xff]
  %v329 = vld [vmem:[%s4 + $0x28] sm:$0xff]
  %v330 = vld [vmem:[%s4 + $0x30] sm:$0xff]
  %v331 = vld [vmem:[%s4 + $0x38] sm:$0xff]
  %v332 = vld [vmem:[%s4 + $0x40] sm:$0xff]
  %v333 = vld [vmem:[%s4 + $0x48] sm:$0xff]
  %v334 = vld [vmem:[%s4 + $0x50] sm:$0xff]
  %v335 = vld [vmem:[%s4 + $0x58] sm:$0xff]
  %v336 = vld [vmem:[%s4 + $0x60] sm:$0xff]
  %v337 = vld [vmem:[%s4 + $0x68] sm:$0xff]
  %v338 = vld [vmem:[%s4 + $0x70] sm:$0xff]
  %v339 = vld [vmem:[%s4 + $0x78] sm:$0xff]
  %v340 = vld [vmem:[%s5] sm:$0x1]
  %v342 = vperm.slane %v340, 0
  %344 = vmatpush.msra.mxu0 %v339
  %345 = vmatpush.msra.mxu0 %v338
  %346 = vmatpush.msra.mxu0 %v337
  %347 = vmatpush.msra.mxu0 %v336
  %348 = vmatpush.msra.mxu0 %v335
  %349 = vmatpush.msra.mxu0 %v334
  %350 = vmatpush.msra.mxu0 %v333
  %351 = vmatpush.msra.mxu0 %v332
  %352 = vmatpush.msra.mxu0 %v331
  %353 = vmatpush.msra.mxu0 %v330
  %354 = vmatpush.msra.mxu0 %v329
  %355 = vmatpush.msra.mxu0 %v328
  %356 = vmatpush.msra.mxu0 %v327
  %357 = vmatpush.msra.mxu0 %v326
  %358 = vmatpush.msra.mxu0 %v325
  %359 = vmatpush.msra.mxu0 %v324
  %360 = vmatmul.f32.gmra.mxu0 %v323
  %v361 = vpop.f32.mrf.mxu0
  %v362 = vadd.f32 %v342, %v361
  %363 = vdwg.mxu0
  %364 = vst [vmem:[%s6] sm:$0xff] %v362
  // Predicated region
  $region26: #{simple_rnn_forward.1} parent=0 // pred_check
    _
  $region27: #{simple_rnn_forward.1} parent=0 // pred_check_branch
    %366 = sbr.rel (0) target = $region29
  $region28: #{simple_rnn_forward.1} parent=0 // pred_region
    _
  $region29: #{simple_rnn_forward.1} parent=0 // pred_fallthru
    _
  // Predicated region
  $region30: #{simple_rnn_forward.1} parent=0 // pred_check
    _
  $region31: #{simple_rnn_forward.1} parent=0 // pred_check_branch
    %368 = sbr.rel (0) target = $region33
  $region32: #{simple_rnn_forward.1} parent=0 // pred_region
    _
  $region33: #{simple_rnn_forward.1} parent=0 // pred_fallthru
    _

</llo_original>
